<compile_context>
chip_gen: v6e
topology: v6e:2x2x1
jax: 0.10.0
libtpu: 0.0.40
codegen_flags: <defaults>
</compile_context>

<pallas_src>
import functools

import jax
import jax.numpy as jnp
import numpy as np
from jax.experimental import pallas as pl
from jax.experimental.pallas import tpu as pltpu


def _pow_static(base, gamma):
    """(base ** gamma) with gamma a static Python float.

    Small integer gamma -> repeated VPU multiplies (avoids EUP exp/log pow).
    """
    g = float(gamma)
    if g == int(g) and 0 <= int(g) <= 8:
        gi = int(g)
        if gi == 0:
            return jnp.ones_like(base)
        r = base
        for _ in range(gi - 1):
            r = r * base
        return r
    return jnp.power(base, jnp.float32(g))


def _sentinels_for_dtype(dtype):
    """Missing-codes (9, 999, -1) as they survive a round-trip through `dtype`.

    E.g. bf16 cannot represent 999 (rounds to 1000); comparing against the
    round-tripped value keeps the mask correct for narrow target dtypes.
    """
    vals = (9.0, 999.0, -1.0)
    try:
        dt = np.dtype(dtype)
        return tuple(float(np.asarray(v, dtype=dt).astype(np.float32)) for v in vals)
    except Exception:
        return vals


def _focal_elementwise(x, t, alpha, gamma, sentinels):
    """Elementwise focal loss + valid-mask, all in f32."""
    s9, s999, sm1 = sentinels
    invalid = (t == s9) | (t == s999) | (t == sm1)
    mask = jnp.where(invalid, 0.0, 1.0)
    # numerically stable BCE-with-logits, weighted by alpha
    # (matches nn.BCEWithLogitsLoss(weight=alpha, reduction='none'))
    ce = jnp.maximum(x, 0.0) - x * t + jnp.log1p(jnp.exp(-jnp.abs(x)))
    ce = ce * alpha * mask
    pt = jnp.exp(-ce)
    focal = _pow_static(1.0 - pt, gamma) * ce
    return focal, mask


def _bounds_mask(shape, tile_n, n_rows, n_cols):
    """Validity mask for block positions that overhang the true (N, C) array."""
    ok = None
    if n_rows is not None:
        row = jax.lax.broadcasted_iota(jnp.int32, shape, 0)
        ok = (row + pl.program_id(0) * tile_n) < n_rows
    if n_cols is not None:
        col_ok = jax.lax.broadcasted_iota(jnp.int32, shape, 1) < n_cols
        ok = col_ok if ok is None else (ok & col_ok)
    return ok


def _focal_reduce_kernel(x_ref, t_ref, alpha_ref, sum_ref, cnt_ref, *,
                         gamma, sentinels, tile_n, n_rows, n_cols):
    """'mean'/'sum' path: per-tile partial sums only (no elementwise writeback)."""
    x = x_ref[...].astype(jnp.float32)
    t = t_ref[...].astype(jnp.float32)
    alpha = alpha_ref[...].astype(jnp.float32)
    ok = _bounds_mask(x.shape, tile_n, n_rows, n_cols)
    if ok is not None:
        # Overhanging rows/cols of a partial block hold garbage; neutralize so
        # they contribute exactly 0 to both partial sums (sentinel -> mask 0).
        x = jnp.where(ok, x, 0.0)
        t = jnp.where(ok, t, jnp.float32(sentinels[0]))
    focal, mask = _focal_elementwise(x, t, alpha, gamma, sentinels)
    sum_ref[0, 0] = jnp.sum(focal)
    cnt_ref[0, 0] = jnp.sum(mask)


def _focal_none_kernel(x_ref, t_ref, alpha_ref, focal_ref, *, gamma, sentinels):
    """'none' path: elementwise focal loss, stored in the output dtype."""
    x = x_ref[...].astype(jnp.float32)
    t = t_ref[...].astype(jnp.float32)
    alpha = alpha_ref[...].astype(jnp.float32)
    focal, _ = _focal_elementwise(x, t, alpha, gamma, sentinels)
    # Overhanging rows/cols of a partial block are garbage but are dropped on
    # write, so no masking is needed here.
    focal_ref[...] = focal.astype(focal_ref.dtype)


def _vmem_capacity_bytes():
    try:
        cap = getattr(pltpu.get_tpu_info(), "vmem_capacity_bytes", None)
        if cap:
            return int(cap)
    except Exception:
        pass
    return 64 * 1024 * 1024   # conservative: v7x per-TC capacity


def multiclass_focal_loss(inputs, targets, alpha, gamma, reduction='mean',
                          tile_n=None):
    """Pallas-backed focal loss.

    inputs/targets: (N, C); alpha: (C,); gamma: static scalar.
    NOTE: gamma must be concrete (not a jit-traced value) — it is specialized
    into the kernel so integer gamma uses VPU multiplies instead of EUP pow.
    """
    if reduction not in ('mean', 'sum', 'none'):
        raise ValueError('not valid reduction method')

    N, C = inputs.shape
    gamma_static = float(gamma)
    sentinels = _sentinels_for_dtype(targets.dtype)
    write_focal = (reduction == 'none')
    out_dtype = inputs.dtype

    # Lane-dense class dimension for the DMA'd blocks (arrays are NOT padded).
    C_pad = max(128, ((C + 127) // 128) * 128)

    # Generation-aware tile sizing: keep the double-buffered working set well
    # inside this chip's VMEM (64 MiB/TC on v7x, 128 MiB on v5e/v6e).
    vmem_cap = _vmem_capacity_bytes()
    vmem_limit = min((vmem_cap * 3) // 4, 100 * 1024 * 1024)
    budget = max(8 * 1024 * 1024, vmem_limit - (4 << 20))

    out_bytes = np.dtype(out_dtype).itemsize if write_focal else 0
    per_row_bytes = C_pad * (inputs.dtype.itemsize + targets.dtype.itemsize
                             + out_bytes)
    if tile_n is None:
        max_rows = max(8, (budget // (2 * per_row_bytes)) // 8 * 8)
        tile_n = min(max_rows, 8192)
    tile_n = max(8, (tile_n // 8) * 8)
    tile_n = min(tile_n, ((N + 7) // 8) * 8)   # don't tile past the data

    num_tiles = pl.cdiv(N, tile_n)
    # Static flags: only emit in-kernel bounds masking when the block grid
    # actually overhangs the array (ragged N and/or non-multiple-of-128 C).
    n_rows_arg = N if num_tiles * tile_n != N else None
    n_cols_arg = C if C_pad != C else None

    alpha2d = jnp.asarray(alpha, dtype=jnp.float32).reshape(1, C)
    if C_pad != C:
        alpha2d = jnp.pad(alpha2d, ((0, 0), (0, C_pad - C)))   # tiny (1, C) row

    in_specs = [
        pl.BlockSpec((tile_n, C_pad), lambda i: (i, 0)),
        pl.BlockSpec((tile_n, C_pad), lambda i: (i, 0)),
        pl.BlockSpec((1, C_pad), lambda i: (0, 0)),
    ]
    compiler_params = pltpu.CompilerParams(
        dimension_semantics=("parallel",),
        vmem_limit_bytes=int(vmem_limit),
    )

    elems = N * C
    in_traffic = elems * (inputs.dtype.itemsize + targets.dtype.itemsize) \
        + C_pad * 4

    if write_focal:
        kernel = functools.partial(_focal_none_kernel, gamma=gamma_static,
                                   sentinels=sentinels)
        cost = pl.CostEstimate(flops=20 * elems, transcendentals=3 * elems,
                               bytes_accessed=in_traffic + elems * out_bytes)
        return pl.pallas_call(
            kernel,
            out_shape=jax.ShapeDtypeStruct((N, C), out_dtype),
            grid_spec=pl.GridSpec(
                grid=(num_tiles,),
                in_specs=in_specs,
                out_specs=pl.BlockSpec((tile_n, C_pad), lambda i: (i, 0)),
            ),
            compiler_params=compiler_params,
            cost_estimate=cost,
        )(inputs, targets, alpha2d)

    kernel = functools.partial(_focal_reduce_kernel, gamma=gamma_static,
                               sentinels=sentinels, tile_n=tile_n,
                               n_rows=n_rows_arg, n_cols=n_cols_arg)
    cost = pl.CostEstimate(flops=20 * elems, transcendentals=3 * elems,
                           bytes_accessed=in_traffic + num_tiles * 8)
    psum, pcnt = pl.pallas_call(
        kernel,
        out_shape=(
            jax.ShapeDtypeStruct((num_tiles, 1), jnp.float32),  # per-tile sum(focal)
            jax.ShapeDtypeStruct((num_tiles, 1), jnp.float32),  # per-tile sum(mask)
        ),
        grid_spec=pl.GridSpec(
            grid=(num_tiles,),
            in_specs=in_specs,
            out_specs=(
                pl.BlockSpec((1, 1), lambda i: (i, 0), memory_space=pltpu.SMEM),
                pl.BlockSpec((1, 1), lambda i: (i, 0), memory_space=pltpu.SMEM),
            ),
        ),
        compiler_params=compiler_params,
        cost_estimate=cost,
    )(inputs, targets, alpha2d)

    fsum = jnp.sum(psum)
    if reduction == 'mean':
        # NOTE: matches PyTorch — no guard against a fully-masked batch (0/0).
        return fsum / jnp.sum(pcnt)
    return fsum  # 'sum'


def _reference(inputs, targets, alpha, gamma, reduction='mean'):
    """Pure-JAX reference mirroring the PyTorch forward exactly."""
    x = inputs.astype(jnp.float32)
    t = targets.astype(jnp.float32)
    mask = jnp.where((t == 9.0) | (t == 999.0) | (t == -1.0), 0.0, 1.0)
    ce = jnp.maximum(x, 0.0) - x * t + jnp.log1p(jnp.exp(-jnp.abs(x)))
    ce = ce * alpha.reshape(1, -1)
    ce = ce * mask
    pt = jnp.exp(-ce)
    focal = (1.0 - pt) ** gamma * ce
    if reduction == 'mean':
        return focal.sum() / mask.sum()
    elif reduction == 'sum':
        return focal.sum()
    return focal


if __name__ == "__main__":
    key = jax.random.PRNGKey(0)
    k1, k2, k3, k4 = jax.random.split(key, 4)

    N, C = 16, 128  # small multi-label problem: 16 samples, 128 classes

    # Deterministic "parameters" from the module __init__:
    alpha = 0.5 + jax.random.uniform(k4, (C,), dtype=jnp.float32)  # in [0.5, 1.5)
    gamma = 2.0

    # Inputs: logits; targets: {0,1} with some positions marked missing (9/999/-1).
    logits = jax.random.normal(k1, (N, C), dtype=jnp.float32) * 2.0
    targets = jax.random.bernoulli(k2, 0.3, (N, C)).astype(jnp.float32)
    miss_code = jax.random.randint(k3, (N, C), 0, 20)
    targets = jnp.where(miss_code == 0, 9.0, targets)
    targets = jnp.where(miss_code == 1, 999.0, targets)
    targets = jnp.where(miss_code == 2, -1.0, targets)

    # Run the Pallas kernels.
    loss_mean = multiclass_focal_loss(logits, targets, alpha, gamma, 'mean')
    loss_sum = multiclass_focal_loss(logits, targets, alpha, gamma, 'sum')
    loss_none = multiclass_focal_loss(logits, targets, alpha, gamma, 'none')
    jax.block_until_ready((loss_mean, loss_sum, loss_none))

    # Verify against the pure-JAX reference.
    ref_mean = _reference(logits, targets, alpha, gamma, 'mean')
    ref_sum = _reference(logits, targets, alpha, gamma, 'sum')
    ref_none = _reference(logits, targets, alpha, gamma, 'none')

    assert jnp.allclose(loss_mean, ref_mean, rtol=1e-5, atol=1e-5)
    assert jnp.allclose(loss_sum, ref_sum, rtol=1e-5, atol=1e-4)
    assert jnp.allclose(loss_none, ref_none, rtol=1e-5, atol=1e-6)

    # Ragged / non-tile-aligned rows (exercises in-kernel bounds masking and
    # OOB-write dropping — no wrapper-side padding or slicing involved).
    N2 = 13
    loss_mean2 = multiclass_focal_loss(logits[:N2], targets[:N2], alpha, gamma, 'mean')
    loss_none2 = multiclass_focal_loss(logits[:N2], targets[:N2], alpha, gamma, 'none')
    jax.block_until_ready((loss_mean2, loss_none2))
    ref_mean2 = _reference(logits[:N2], targets[:N2], alpha, gamma, 'mean')
    ref_none2 = _reference(logits[:N2], targets[:N2], alpha, gamma, 'none')
    assert jnp.allclose(loss_mean2, ref_mean2, rtol=1e-5, atol=1e-5)
    assert jnp.allclose(loss_none2, ref_none2, rtol=1e-5, atol=1e-6)

    print("KERNEL_OK")
</pallas_src>

<mosaic_0001>
module attributes {stable_mosaic.version = 11 : i64} {
  func.func @_focal_reduce_kernel(%arg0: i32, %arg1: memref<16x128xf32, #tpu.memory_space<vmem>>, %arg2: memref<16x128xf32, #tpu.memory_space<vmem>>, %arg3: memref<1x128xf32, #tpu.memory_space<vmem>>, %arg4: memref<1x1xf32, #tpu.memory_space<smem>>, %arg5: memref<1x1xf32, #tpu.memory_space<smem>>) attributes {dimension_semantics = [#tpu.dimension_semantics<parallel>], iteration_bounds = array<i64: 1>, scalar_prefetch = 0 : i64, scratch_operands = 0 : i64, tpu.core_type = #tpu.core_type<tc>, window_params = [{transform_indices = @transform_0, window_bounds = array<i64: 16, 128>}, {transform_indices = @transform_1, window_bounds = array<i64: 16, 128>}, {pipeline_mode = #tpu.pipeline_mode<synchronous>, transform_indices = @transform_2, window_bounds = array<i64: 1, 128>}, {transform_indices = @transform_3, window_bounds = array<i64: 1, 1>}, {transform_indices = @transform_4, window_bounds = array<i64: 1, 1>}]} {
    %c0 = arith.constant 0 : index
    %c0_0 = arith.constant 0 : index
    %0 = vector.load %arg1[%c0, %c0_0] : memref<16x128xf32, #tpu.memory_space<vmem>>, vector<16x128xf32>
    %c0_1 = arith.constant 0 : index
    %c0_2 = arith.constant 0 : index
    %1 = vector.load %arg2[%c0_1, %c0_2] : memref<16x128xf32, #tpu.memory_space<vmem>>, vector<16x128xf32>
    %c0_3 = arith.constant 0 : index
    %c0_4 = arith.constant 0 : index
    %2 = vector.load %arg3[%c0_3, %c0_4] : memref<1x128xf32, #tpu.memory_space<vmem>>, vector<1x128xf32>
    %cst = arith.constant 9.000000e+00 : f32
    %3 = vector.broadcast %cst : f32 to vector<16x128xf32>
    %4 = arith.cmpf oeq, %1, %3 : vector<16x128xf32>
    %cst_5 = arith.constant 9.990000e+02 : f32
    %5 = vector.broadcast %cst_5 : f32 to vector<16x128xf32>
    %6 = arith.cmpf oeq, %1, %5 : vector<16x128xf32>
    %7 = arith.ori %4, %6 : vector<16x128xi1>
    %cst_6 = arith.constant -1.000000e+00 : f32
    %8 = vector.broadcast %cst_6 : f32 to vector<16x128xf32>
    %9 = arith.cmpf oeq, %1, %8 : vector<16x128xf32>
    %10 = arith.ori %7, %9 : vector<16x128xi1>
    %cst_7 = arith.constant 0.000000e+00 : f32
    %cst_8 = arith.constant 1.000000e+00 : f32
    %11 = vector.broadcast %cst_7 : f32 to vector<16x128xf32>
    %12 = vector.broadcast %cst_8 : f32 to vector<16x128xf32>
    %13 = arith.select %10, %11, %12 : vector<16x128xi1>, vector<16x128xf32>
    %cst_9 = arith.constant 0.000000e+00 : f32
    %14 = vector.broadcast %cst_9 : f32 to vector<16x128xf32>
    %15 = arith.maximumf %0, %14 : vector<16x128xf32>
    %16 = arith.mulf %0, %1 : vector<16x128xf32>
    %17 = arith.subf %15, %16 : vector<16x128xf32>
    %18 = math.absf %0 : vector<16x128xf32>
    %cst_10 = arith.constant 0.000000e+00 : f32
    %19 = vector.broadcast %cst_10 : f32 to vector<16x128xf32>
    %20 = arith.subf %19, %18 : vector<16x128xf32>
    %21 = math.exp %20 : vector<16x128xf32>
    %22 = math.log1p %21 : vector<16x128xf32>
    %23 = arith.addf %17, %22 : vector<16x128xf32>
    %24 = vector.broadcast %2 : vector<1x128xf32> to vector<16x128xf32>
    %25 = arith.mulf %23, %24 : vector<16x128xf32>
    %26 = arith.mulf %25, %13 : vector<16x128xf32>
    %cst_11 = arith.constant 0.000000e+00 : f32
    %27 = vector.broadcast %cst_11 : f32 to vector<16x128xf32>
    %28 = arith.subf %27, %26 : vector<16x128xf32>
    %29 = math.exp %28 : vector<16x128xf32>
    %cst_12 = arith.constant 1.000000e+00 : f32
    %30 = vector.broadcast %cst_12 : f32 to vector<16x128xf32>
    %31 = arith.subf %30, %29 : vector<16x128xf32>
    %32 = arith.mulf %31, %31 : vector<16x128xf32>
    %33 = arith.mulf %32, %26 : vector<16x128xf32>
    %34 = vector.shape_cast %33 : vector<16x128xf32> to vector<1x16x128xf32>
    %cst_13 = arith.constant dense<0.000000e+00> : vector<1xf32>
    %35 = vector.multi_reduction <add>, %34, %cst_13 [1, 2] : vector<1x16x128xf32> to vector<1xf32>
    %36 = vector.shape_cast %35 : vector<1xf32> to vector<1x1x1xf32>
    %37 = vector.extract %36[0, 0, 0] : f32 from vector<1x1x1xf32>
    %c0_14 = arith.constant 0 : index
    %c0_15 = arith.constant 0 : index
    %38 = memref.load %arg4[%c0_14, %c0_15] : memref<1x1xf32, #tpu.memory_space<smem>>
    memref.store %37, %arg4[%c0_14, %c0_15] : memref<1x1xf32, #tpu.memory_space<smem>>
    %39 = vector.shape_cast %13 : vector<16x128xf32> to vector<1x16x128xf32>
    %cst_16 = arith.constant dense<0.000000e+00> : vector<1xf32>
    %40 = vector.multi_reduction <add>, %39, %cst_16 [1, 2] : vector<1x16x128xf32> to vector<1xf32>
    %41 = vector.shape_cast %40 : vector<1xf32> to vector<1x1x1xf32>
    %42 = vector.extract %41[0, 0, 0] : f32 from vector<1x1x1xf32>
    %c0_17 = arith.constant 0 : index
    %c0_18 = arith.constant 0 : index
    %43 = memref.load %arg5[%c0_17, %c0_18] : memref<1x1xf32, #tpu.memory_space<smem>>
    memref.store %42, %arg5[%c0_17, %c0_18] : memref<1x1xf32, #tpu.memory_space<smem>>
    return
  }
  func.func @transform_0(%arg0: i32) -> (i32, i32) {
    %c0_i32 = arith.constant 0 : i32
    %c0_i32_0 = arith.constant 0 : i32
    return %arg0, %c0_i32 : i32, i32
  }
  func.func @transform_1(%arg0: i32) -> (i32, i32) {
    %c0_i32 = arith.constant 0 : i32
    %c0_i32_0 = arith.constant 0 : i32
    return %arg0, %c0_i32 : i32, i32
  }
  func.func @transform_2(%arg0: i32) -> (i32, i32) {
    %c0_i32 = arith.constant 0 : i32
    %c0_i32_0 = arith.constant 0 : i32
    %c0_i32_1 = arith.constant 0 : i32
    return %c0_i32, %c0_i32_0 : i32, i32
  }
  func.func @transform_3(%arg0: i32) -> (i32, i32) {
    %c0_i32 = arith.constant 0 : i32
    %c0_i32_0 = arith.constant 0 : i32
    return %arg0, %c0_i32 : i32, i32
  }
  func.func @transform_4(%arg0: i32) -> (i32, i32) {
    %c0_i32 = arith.constant 0 : i32
    %c0_i32_0 = arith.constant 0 : i32
    return %arg0, %c0_i32 : i32, i32
  }
}

</mosaic_0001>

<llo_original>
// kernel: tpu_custom_call.1
$region0: #{tpu_custom_call.1}
  #allocation0 [shape = 'u32[]', space=smem, size = 0x4, offset = 0x4, fixed_abs, tag = 'smem constant byte address 0x4 - core index']
  #allocation1 [shape = 'u32[144,128]{1,0:T(1,128)}', space=vmem, size = 0x12000, scoped, tag = 'internal scratch']
  %s0 = inlined_call_operand.hbm [shape: f32[16,128], index: 0, kind: input, shape index: {}]
  %s1 = inlined_call_operand.hbm [shape: f32[16,128], index: 1, kind: input, shape index: {}]
  %s2 = inlined_call_operand.vmem [shape: f32[1,128], index: 2, kind: input, shape index: {}]
  %s3 = inlined_call_operand.hbm [shape: f32[1,1], index: 3, kind: output, shape index: {0}]
  %s4 = inlined_call_operand.hbm [shape: f32[1,1], index: 4, kind: output, shape index: {1}]
  %5 = xla_tuple %s3, %s4
  %s6 = sld [smem:[#allocation0]]
  $region38: #{tpu_custom_call.1} parent=0
    _
  %s8 = ssub.s32 1, %s6
  %s9 = scalar_select 0, %s8, %s6
  $region1: #{tpu_custom_call.1} parent=0
    #allocation2 [shape = 'u8[8192]{0}', space=vmem, size = 0x2000, scoped, tag = 'input window, operand 0, single buffered']
    #allocation3 [shape = 's32[1]{0}', space=sflag, size = 0x4, scoped, tag = 'scoped memory for tpu_custom_call.1']
    #allocation4 [shape = 's32[1]{0}', space=sflag, size = 0x4, scoped, tag = 'scoped memory for tpu_custom_call.1']
    #allocation5 [shape = 'u8[8192]{0}', space=vmem, size = 0x2000, scoped, tag = 'input window, operand 1, single buffered']
    #allocation6 [shape = 's32[1]{0}', space=sflag, size = 0x4, scoped, tag = 'scoped memory for tpu_custom_call.1']
    #allocation7 [shape = 'u8[512]{0}', space=smem, size = 0x200, scoped, tag = 'output window, operand 0, single buffered']
    #allocation8 [shape = 'u8[512]{0}', space=smem, size = 0x200, scoped, tag = 'output window, operand 1, single buffered']
    #allocation9 [shape = 's32[1]{0}', space=sflag, size = 0x4, scoped, tag = 'scoped memory for tpu_custom_call.1']
    %10 = vsyncpa [#allocation3], 0
    %11 = vsyncpa [#allocation6], 0
    %12 = vsyncpa [#allocation4], 0
    %13 = vsyncpa [#allocation9], 0
    // Predicated region
    $region2: #{tpu_custom_call.1} parent=1 // pred_check
      _
    $region3: #{tpu_custom_call.1} parent=1 // pred_check_branch
      %15 = sbr.rel (0) target = $region5
    $region4: #{tpu_custom_call.1} parent=1 // pred_region
      %s17 = ssub.s32 256, 256
      %18 = vsyncadd [#allocation3], %s17
      %s19 = sshll.u32 [#allocation2], 4
      %s20 = int_to_ptr.vmem [resolvable:$true] %s19
      %25 = dma.hbm_to_vmem [thread:$0]  %s0, 256, %s20, [#allocation3], 128, 128, 8
    $region5: #{tpu_custom_call.1} parent=1 // pred_fallthru
      _
    // Predicated region
    $region6: #{tpu_custom_call.1} parent=1 // pred_check
      _
    $region7: #{tpu_custom_call.1} parent=1 // pred_check_branch
      %27 = sbr.rel (0) target = $region9
    $region8: #{tpu_custom_call.1} parent=1 // pred_region
      %s29 = ssub.s32 256, 256
      %30 = vsyncadd [#allocation6], %s29
      %s31 = sshll.u32 [#allocation5], 4
      %s32 = int_to_ptr.vmem [resolvable:$true] %s31
      %37 = dma.hbm_to_vmem [thread:$0]  %s1, 256, %s32, [#allocation6], 128, 128, 8
    $region9: #{tpu_custom_call.1} parent=1 // pred_fallthru
      _
    // Predicated region
    $region10: #{tpu_custom_call.1} parent=1 // pred_check
      _
    $region11: #{tpu_custom_call.1} parent=1 // pred_check_branch
      %39 = sbr.rel (0) target = $region13
    $region12: #{tpu_custom_call.1} parent=1 // pred_region
      _
    $region13: #{tpu_custom_call.1} parent=1 // pred_fallthru
      _
    // Predicated region
    $region14: #{tpu_custom_call.1} parent=1 // pred_check
      _
    $region15: #{tpu_custom_call.1} parent=1 // pred_check_branch
      %41 = sbr.rel (0) target = $region17
    $region16: #{tpu_custom_call.1} parent=1 // pred_region
      %42 = dma.done [#allocation3], 256
    $region17: #{tpu_custom_call.1} parent=1 // pred_fallthru
      _
    // Predicated region
    $region18: #{tpu_custom_call.1} parent=1 // pred_check
      _
    $region19: #{tpu_custom_call.1} parent=1 // pred_check_branch
      %44 = sbr.rel (0) target = $region21
    $region20: #{tpu_custom_call.1} parent=1 // pred_region
      %45 = dma.done [#allocation6], 256
    $region21: #{tpu_custom_call.1} parent=1 // pred_fallthru
      _
    %v46 = vld [vmem:[#allocation2] sm:$0xff]
    %v47 = vld [vmem:[#allocation2 + $0x8] sm:$0xff]
    %v48 = vld [vmem:[#allocation5] sm:$0xff]
    %v49 = vld [vmem:[#allocation5 + $0x8] sm:$0xff]
    %v50 = vld [vmem:[%s2] sm:$0x1]
    %vm51 = vcmp.eq.f32.partialorder %v48, 9.0
    %vm52 = vcmp.eq.f32.partialorder %v49, 9.0
    %vm53 = vcmp.eq.f32.partialorder %v48, 999.0
    %vm54 = vcmp.eq.f32.partialorder %v49, 999.0
    %vm55 = vmor %vm51, %vm53
    %vm56 = vmor %vm52, %vm54
    %vm57 = vcmp.eq.f32.partialorder %v48, -1.0
    %vm58 = vcmp.eq.f32.partialorder %v49, -1.0
    %vm59 = vmor %vm55, %vm57
    %vm60 = vmor %vm56, %vm58
    %v61 = vsel %vm59, 0.0, 1.0
    %v62 = vsel %vm60, 0.0, 1.0
    %v63 = vmax.f32 %v46, 0.0
    %v64 = vmax.f32 %v47, 0.0
    %v65 = vmul.f32 %v46, %v48
    %v66 = vmul.f32 %v47, %v49
    %v67 = vsub.f32 %v63, %v65
    %v68 = vsub.f32 %v64, %v66
    %v69 = vand.u32 2147483647, %v46
    %v70 = vand.u32 2147483647, %v47
    %v71 = vsub.f32 0.0, %v69
    %v72 = vsub.f32 0.0, %v70
    %v73 = vmul.f32 %v71, 1.442695
    %v74 = vpow.pop %v73
    %v75 = vmul.f32 %v72, 1.442695
    %v76 = vpow.pop %v75
    %v77 = vadd.f32 %v74, 1.0
    %v78 = vlog2.pop %v77
    %v79 = vmul.f32 %v78, 0.6931472
    %v80 = vmul.f32 -0.5, %v74
    %v81 = vadd.f32 %v80, 1.0
    %v82 = vmul.f32 %v81, %v74
    %v83 = vand.u32 2147483647, %v74
    %vm84 = vcmp.lt.f32.partialorder %v83, 0.0004427343
    %v85 = vsel %vm84, %v82, %v79
    %v86 = vadd.f32 %v76, 1.0
    %v87 = vlog2.pop %v86
    %v88 = vmul.f32 %v87, 0.6931472
    %v89 = vmul.f32 -0.5, %v76
    %v90 = vadd.f32 %v89, 1.0
    %v91 = vmul.f32 %v90, %v76
    %v92 = vand.u32 2147483647, %v76
    %vm93 = vcmp.lt.f32.partialorder %v92, 0.0004427343
    %v94 = vsel %vm93, %v91, %v88
    %v95 = vadd.f32 %v67, %v85
    %v96 = vadd.f32 %v68, %v94
    %v98 = vlaneseq
    %v99 = vshrl.u32 %v98, 7
    %v100 = vsub.s32 0, %v99
    %v101 = vrot.slane %v50, %v100
    %v103 = vmul.f32 %v95, %v101
    %v104 = vmul.f32 %v96, %v101
    %v105 = vmul.f32 %v103, %v61
    %v106 = vmul.f32 %v104, %v62
    %v107 = vsub.f32 0.0, %v105
    %v108 = vsub.f32 0.0, %v106
    %v109 = vmul.f32 %v107, 1.442695
    %v110 = vpow.pop %v109
    %v111 = vmul.f32 %v108, 1.442695
    %v112 = vpow.pop %v111
    %v113 = vsub.f32 1.0, %v110
    %v114 = vsub.f32 1.0, %v112
    %v115 = vmul.f32 %v113, %v113
    %v116 = vmul.f32 %v114, %v114
    %v117 = vmul.f32 %v115, %v105
    %v118 = vmul.f32 %v116, %v106
    %v119 = vadd.f32 %v117, %v118
    %120 = vadd.xlane.f32.xlu0 %v119
    %v121 = vpop.xlane.xlu0 %120
    %v122 = vrot.slane %v121, 4
    %v123 = vadd.f32 %v121, %v122
    %v124 = vrot.slane %v123, 2
    %v125 = vadd.f32 %v123, %v124
    %v126 = vrot.slane %v125, 1
    %v127 = vadd.f32 %v125, %v126
    %s128 = vtos %v127
    %s129 = scalar_lea.smem [#allocation7], 0
    %130 = sst [smem:[%s129]] %s128
    %v131 = vadd.f32 %v61, %v62
    %132 = vadd.xlane.f32.xlu0 %v131
    %v133 = vpop.xlane.xlu0 %132
    %v134 = vrot.slane %v133, 4
    %v135 = vadd.f32 %v133, %v134
    %v136 = vrot.slane %v135, 2
    %v137 = vadd.f32 %v135, %v136
    %v138 = vrot.slane %v137, 1
    %v139 = vadd.f32 %v137, %v138
    %s140 = vtos %v139
    %s141 = scalar_lea.smem [#allocation8], 0
    %142 = sst [smem:[%s141]] %s140
    // Predicated region
    $region22: #{tpu_custom_call.1} parent=1 // pred_check
      _
    $region23: #{tpu_custom_call.1} parent=1 // pred_check_branch
      %144 = sbr.rel (0) target = $region25
    $region24: #{tpu_custom_call.1} parent=1 // pred_region
      %s146 = ssub.s32 16, 16
      %147 = vsyncadd [#allocation4], %s146
      %150 = dma.smem_to_hbm [#allocation7], 16, %s3, [#allocation4]
    $region25: #{tpu_custom_call.1} parent=1 // pred_fallthru
      _
    // Predicated region
    $region26: #{tpu_custom_call.1} parent=1 // pred_check
      _
    $region27: #{tpu_custom_call.1} parent=1 // pred_check_branch
      %152 = sbr.rel (0) target = $region29
    $region28: #{tpu_custom_call.1} parent=1 // pred_region
      %s154 = ssub.s32 16, 16
      %155 = vsyncadd [#allocation9], %s154
      %158 = dma.smem_to_hbm [#allocation8], 16, %s4, [#allocation9]
    $region29: #{tpu_custom_call.1} parent=1 // pred_fallthru
      _
    // Predicated region
    $region30: #{tpu_custom_call.1} parent=1 // pred_check
      _
    $region31: #{tpu_custom_call.1} parent=1 // pred_check_branch
      %160 = sbr.rel (0) target = $region33
    $region32: #{tpu_custom_call.1} parent=1 // pred_region
      %161 = dma.done [#allocation4], 16
    $region33: #{tpu_custom_call.1} parent=1 // pred_fallthru
      _
    // Predicated region
    $region34: #{tpu_custom_call.1} parent=1 // pred_check
      _
    $region35: #{tpu_custom_call.1} parent=1 // pred_check_branch
      %163 = sbr.rel (0) target = $region37
    $region36: #{tpu_custom_call.1} parent=1 // pred_region
      %164 = dma.done [#allocation9], 16
    $region37: #{tpu_custom_call.1} parent=1 // pred_fallthru
      _
    %165 = sfence
    %166 = vsyncpa [#allocation3], 1
    %167 = vsyncpa [#allocation6], 1
    %168 = vsyncpa [#allocation4], 1
    %169 = vsyncpa [#allocation9], 1

</llo_original>
